<compile_context>
chip_gen: v6e
topology: v6e:2x2x1
jax: 0.10.0
libtpu: 0.0.40
codegen_flags: <defaults>
</compile_context>

<pallas_src>
import jax
import jax.numpy as jnp
from jax.experimental import pallas as pl
from jax.experimental.pallas import tpu as pltpu

_LANE = 128


def _hswish_kernel(x_ref, o_ref):
    # ~5 VPU ops per vreg — far below VALU saturation; everything is DMA-bound.
    x = x_ref[...].astype(jnp.float32)
    r6 = jnp.clip(x + 3.0, 0.0, 6.0)          # relu6(x + 3)
    o_ref[...] = (x * r6 / 6.0).astype(o_ref.dtype)


def _hswish_jnp(x):
    xf = x.astype(jnp.float32)
    return (xf * jnp.clip(xf + 3.0, 0.0, 6.0) / 6.0).astype(x.dtype)


def _cdiv(a, b):
    return (a + b - 1) // b


def _vmem_capacity_bytes() -> int:
    """Best-effort per-TensorCore VMEM capacity; conservative (v7x) fallback."""
    try:
        cap = getattr(pltpu.get_tpu_info(), "vmem_capacity_bytes", None)
        if cap:
            return int(cap)
    except Exception:
        pass
    try:
        kind = jax.devices()[0].device_kind.lower()
        if "v5" in kind or "v6" in kind or "trillium" in kind:
            return 128 << 20  # v5e / v6e (128 MiB physical VMEM)
    except Exception:
        pass
    return 64 << 20  # v7x / unknown: be conservative


def _hswish_2d(x2d, rows, width, itemsize, sublane):
    # Generation-aware budget.  Live VMEM ~= 4 x block (double-buffered in+out).
    if _vmem_capacity_bytes() >= (96 << 20):
        target_block_bytes, vmem_limit = 8 << 20, 64 << 20     # v5e / v6e
    else:
        target_block_bytes, vmem_limit = 4 << 20, 32 << 20     # v7x / unknown

    row_bytes = width * itemsize

    # Number of grid steps: enough that each block <= target size, and at least
    # 4 (even) balanced sublane-aligned steps when rows allow, so the two v7x
    # TensorCores each get >=2 pipelinable steps.
    max_steps = max(1, rows // sublane)
    steps_cap = _cdiv(rows * row_bytes, target_block_bytes)
    desired = max(min(4, max_steps), steps_cap)
    if desired % 2 == 1 and desired + 1 <= max_steps:
        desired += 1
    desired = min(desired, max_steps)

    tr = _cdiv(_cdiv(rows, desired), sublane) * sublane
    tr = min(max(tr, sublane), rows)          # == rows (full extent) if rows < sublane
    num_blocks = _cdiv(rows, tr)              # cdiv grid: Pallas masks the tail block

    n_main = rows * width
    return pl.pallas_call(
        _hswish_kernel,
        out_shape=jax.ShapeDtypeStruct((rows, width), x2d.dtype),
        grid_spec=pltpu.PrefetchScalarGridSpec(
            num_scalar_prefetch=0,
            grid=(num_blocks,),
            in_specs=[pl.BlockSpec((tr, width), lambda i: (i, 0))],
            out_specs=pl.BlockSpec((tr, width), lambda i: (i, 0)),
        ),
        compiler_params=pltpu.CompilerParams(
            dimension_semantics=("parallel",),
            vmem_limit_bytes=vmem_limit,
        ),
        cost_estimate=pl.CostEstimate(
            flops=5 * n_main,
            transcendentals=0,
            bytes_accessed=2 * n_main * itemsize,
        ),
    )(x2d)


@jax.jit
def hswish(x: jnp.ndarray) -> jnp.ndarray:
    """Elementwise HSwish (x * relu6(x + 3) / 6); same shape/dtype as input."""
    orig_shape = x.shape
    dtype = x.dtype
    if not jnp.issubdtype(dtype, jnp.floating):
        # TODO(synk): integer HSwish is out of scope for the kernel path.
        return _hswish_jnp(x)

    total = x.size
    if total == 0:
        return x

    itemsize = jnp.dtype(dtype).itemsize
    sublane = max(8, 32 // itemsize)          # 8 f32, 16 bf16/f16

    flat = x.reshape(-1)
    main = (total // _LANE) * _LANE
    if main == 0:
        # Fewer than 128 elements: not worth a kernel launch.
        return _hswish_jnp(x)

    # Widest lane dim (multiple of 128, up to 2048) dividing the kernel region,
    # preferring one that leaves at least `sublane` rows.
    width = _LANE
    found = False
    for w in (2048, 1024, 512, 256, 128):
        if main % w == 0 and main // w >= sublane:
            width, found = w, True
            break
    if not found:
        for w in (2048, 1024, 512, 256, 128):
            if main % w == 0:
                width = w
                break
    rows = main // width

    out_main = _hswish_2d(flat[:main].reshape(rows, width), rows, width,
                          itemsize, sublane)

    if main == total:
        return out_main.reshape(orig_shape)
    # Unaligned tail (< 128 elements): plain jnp; no full-array pad/slice pass.
    tail = _hswish_jnp(flat[main:])
    return jnp.concatenate([out_main.reshape(-1), tail]).reshape(orig_shape)


def _hswish_ref(x):
    xf = x.astype(jnp.float32)
    return (xf * jnp.clip(xf + 3.0, 0.0, 6.0) / 6.0).astype(x.dtype)


if __name__ == "__main__":
    key = jax.random.PRNGKey(0)
    # NCHW input, consistent with PyTorch conv-activation usage.
    x = jax.random.normal(key, (2, 4, 16, 16), dtype=jnp.float32) * 4.0

    out = jax.block_until_ready(hswish(x))
    ref = _hswish_ref(x)
    assert out.shape == x.shape and out.dtype == x.dtype
    assert jnp.allclose(out, ref, atol=1e-6, rtol=1e-6), "mismatch vs reference"

    # Exercise the unaligned-tail path (total not a multiple of 128).
    x2 = jax.random.normal(jax.random.PRNGKey(1), (3, 5, 7, 11), dtype=jnp.float32) * 4.0
    out2 = jax.block_until_ready(hswish(x2))
    assert out2.shape == x2.shape and out2.dtype == x2.dtype
    assert jnp.allclose(out2, _hswish_ref(x2), atol=1e-6, rtol=1e-6), "tail mismatch"

    print("KERNEL_OK")
</pallas_src>

<mosaic_0001>
module attributes {stable_mosaic.version = 11 : i64} {
  func.func @_hswish_kernel(%arg0: i32, %arg1: memref<8x256xf32, #tpu.memory_space<vmem>>, %arg2: memref<8x256xf32, #tpu.memory_space<vmem>>) attributes {dimension_semantics = [#tpu.dimension_semantics<parallel>], iteration_bounds = array<i64: 1>, scalar_prefetch = 0 : i64, scratch_operands = 0 : i64, tpu.core_type = #tpu.core_type<tc>, window_params = [{transform_indices = @transform_0, window_bounds = array<i64: 8, 256>}, {transform_indices = @transform_1, window_bounds = array<i64: 8, 256>}]} {
    %c0 = arith.constant 0 : index
    %c0_0 = arith.constant 0 : index
    %0 = vector.load %arg1[%c0, %c0_0] : memref<8x256xf32, #tpu.memory_space<vmem>>, vector<8x256xf32>
    %cst = arith.constant 3.000000e+00 : f32
    %1 = vector.broadcast %cst : f32 to vector<8x256xf32>
    %2 = arith.addf %0, %1 : vector<8x256xf32>
    %cst_1 = arith.constant 0.000000e+00 : f32
    %cst_2 = arith.constant 6.000000e+00 : f32
    %3 = vector.broadcast %cst_1 : f32 to vector<8x256xf32>
    %4 = arith.maximumf %3, %2 : vector<8x256xf32>
    %5 = vector.broadcast %cst_2 : f32 to vector<8x256xf32>
    %6 = arith.minimumf %5, %4 : vector<8x256xf32>
    %7 = arith.mulf %0, %6 : vector<8x256xf32>
    %cst_3 = arith.constant 6.000000e+00 : f32
    %8 = vector.broadcast %cst_3 : f32 to vector<8x256xf32>
    %9 = arith.divf %7, %8 : vector<8x256xf32>
    %c0_4 = arith.constant 0 : index
    %c0_5 = arith.constant 0 : index
    %10 = vector.load %arg2[%c0_4, %c0_5] : memref<8x256xf32, #tpu.memory_space<vmem>>, vector<8x256xf32>
    tpu.vector_store %arg2[%c0_4, %c0_5], %9 {strides = array<i32>} : memref<8x256xf32, #tpu.memory_space<vmem>>, vector<8x256xf32>,
    return
  }
  func.func @transform_0(%arg0: i32) -> (i32, i32) {
    %c0_i32 = arith.constant 0 : i32
    %c0_i32_0 = arith.constant 0 : i32
    return %arg0, %c0_i32 : i32, i32
  }
  func.func @transform_1(%arg0: i32) -> (i32, i32) {
    %c0_i32 = arith.constant 0 : i32
    %c0_i32_0 = arith.constant 0 : i32
    return %arg0, %c0_i32 : i32, i32
  }
}

</mosaic_0001>

<llo_original>
// kernel: hswish.1
$region0: #{hswish.1}
  #allocation0 [shape = 'u32[]', space=smem, size = 0x4, offset = 0x4, fixed_abs, tag = 'smem constant byte address 0x4 - core index']
  #allocation1 [shape = 'u32[144,128]{1,0:T(1,128)}', space=vmem, size = 0x12000, scoped, tag = 'internal scratch']
  %s0 = inlined_call_operand.vmem [shape: f32[8,256], index: 0, kind: input, shape index: {}]
  %s1 = inlined_call_operand.vmem [shape: f32[8,256], index: 1, kind: output, shape index: {}]
  %s2 = sld [smem:[#allocation0]]
  $region14: #{hswish.1} parent=0
    _
  %s4 = ssub.s32 1, %s2
  %s5 = scalar_select 0, %s4, %s2
  // Predicated region
  $region2: #{hswish.1} parent=0 // pred_check
    _
  $region3: #{hswish.1} parent=0 // pred_check_branch
    %7 = sbr.rel (0) target = $region5
  $region4: #{hswish.1} parent=0 // pred_region
    _
  $region5: #{hswish.1} parent=0 // pred_fallthru
    _
  %v8 = vld [vmem:[%s0] sm:$0xff]
  %v9 = vld [vmem:[%s0 + $0x8] sm:$0xff]
  %v10 = vadd.f32 %v8, 3.0
  %v11 = vadd.f32 %v9, 3.0
  %v12 = vmax.f32 %v10, 0.0
  %v13 = vmax.f32 %v11, 0.0
  %v14 = vmin.f32 %v12, 6.0
  %v15 = vmin.f32 %v13, 6.0
  %v16 = vmul.f32 %v8, %v14
  %v17 = vmul.f32 %v9, %v15
  %v18 = vrcp.pop 6.0
  %v19 = vmul.f32 %v16, %v18
  %v20 = vmul.f32 %v17, %v18
  %21 = vst [vmem:[%s1] sm:$0xff] %v19
  %22 = vst [vmem:[%s1 + $0x8] sm:$0xff] %v20
  // Predicated region
  $region6: #{hswish.1} parent=0 // pred_check
    _
  $region7: #{hswish.1} parent=0 // pred_check_branch
    %24 = sbr.rel (0) target = $region9
  $region8: #{hswish.1} parent=0 // pred_region
    _
  $region9: #{hswish.1} parent=0 // pred_fallthru
    _
  // Predicated region
  $region10: #{hswish.1} parent=0 // pred_check
    _
  $region11: #{hswish.1} parent=0 // pred_check_branch
    %26 = sbr.rel (0) target = $region13
  $region12: #{hswish.1} parent=0 // pred_region
    _
  $region13: #{hswish.1} parent=0 // pred_fallthru
    _

</llo_original>
